<compile_context>
chip_gen: v7x
topology: tpu7x:2x2x1
jax: 0.10.0
libtpu: 0.0.40
codegen_flags: <defaults>
</compile_context>

<pallas_src>
import functools

import numpy as np
import jax
import jax.numpy as jnp
from jax.experimental import pallas as pl
from jax.experimental.pallas import tpu as pltpu


# ------------------------------ helpers --------------------------------------
def _rup(x, m):
    return ((x + m - 1) // m) * m


def _pad2(a, rows, cols):
    a = np.asarray(a, np.float32)
    out = np.zeros((rows, cols), np.float32)
    out[: a.shape[0], : a.shape[1]] = a
    return out


def _vmem_budget_bytes():
    """Generation-aware scoped-VMEM budget (leave headroom for double buffers
    and internal scratch): ~51 MiB on v7x (64 MiB phys), ~102 MiB on v5e/v6e."""
    try:
        cap = int(pltpu.get_tpu_info().vmem_capacity_bytes)
    except Exception:  # pragma: no cover - conservative fallback
        cap = 64 << 20
    return int(cap * 0.8)


def _pad_atom_rows(n):
    """Padded atom-row count: multiple of 16 (bf16 sublane pack); once tiling
    kicks in, a multiple of 512 so TM=256 / TK=512 tiles divide it exactly."""
    n16 = _rup(max(int(n), 16), 16)
    return n16 if n16 <= 512 else _rup(n16, 512)


def _tiles_for(np_rows):
    """(row tile TM, contraction tile TK) for the aggregation kernel."""
    if np_rows <= 512:
        return np_rows, np_rows          # single block in each direction
    return 256, 512


# ----------------------------- Pallas kernels ---------------------------------
def _embed_kernel(x_ref, wa_ref, ba_ref, emb_ref):
    # atom_embed: Linear(atom_in, atom_out) with bias; emitted as bf16 so the
    # downstream O(N^2) aggregation streams half the bytes.
    emb_ref[...] = (
        jnp.dot(x_ref[...], wa_ref[...], preferred_element_type=jnp.float32)
        + ba_ref[...]
    ).astype(emb_ref.dtype)


def _aggregate_kernel(a_ref, emb_ref, out_ref, acc_ref):
    # x_atoms_new = A_norm @ x_emb, tiled over (row tiles, K tiles).
    @pl.when(pl.program_id(1) == 0)
    def _():
        acc_ref[...] = jnp.zeros_like(acc_ref)

    acc_ref[...] += jnp.dot(
        a_ref[...], emb_ref[...], preferred_element_type=jnp.float32
    )

    @pl.when(pl.program_id(1) == pl.num_programs(1) - 1)
    def _():
        out_ref[...] = acc_ref[...]


def _frag_kernel(m_ref, xn_ref, w1_ref, b1_ref, w2_ref, b2_ref, out_ref):
    # atom->frag pooling + frag-graph aggregation pre-composed host-side into
    # one matrix M = F_adj @ S_frag (bf16), followed by the frag MLP.
    agg = jnp.dot(
        m_ref[...],
        xn_ref[...].astype(jnp.bfloat16),
        preferred_element_type=jnp.float32,
    )
    h = jnp.maximum(
        jnp.dot(agg, w1_ref[...], preferred_element_type=jnp.float32)
        + b1_ref[...],
        0.0,
    )
    out_ref[...] = (
        jnp.dot(h, w2_ref[...], preferred_element_type=jnp.float32) + b2_ref[...]
    )


# ----------------------------- pallas_call wrappers ----------------------------
def _embed_call(x_p, Wa, ba, vmem_budget):
    Np, AIp = x_p.shape
    AOp = Wa.shape[1]
    TM, _ = _tiles_for(Np)
    cost = pl.CostEstimate(
        flops=int(2 * Np * AIp * AOp),
        transcendentals=0,
        bytes_accessed=int(4 * (Np * AIp + AIp * AOp + AOp) + 2 * Np * AOp),
    )
    return pl.pallas_call(
        _embed_kernel,
        out_shape=jax.ShapeDtypeStruct((Np, AOp), jnp.bfloat16),
        grid=(Np // TM,),
        in_specs=[
            pl.BlockSpec((TM, AIp), lambda i: (i, 0)),
            pl.BlockSpec((AIp, AOp), lambda i: (0, 0)),   # weights resident
            pl.BlockSpec((1, AOp), lambda i: (0, 0)),     # bias resident
        ],
        out_specs=pl.BlockSpec((TM, AOp), lambda i: (i, 0)),
        compiler_params=pltpu.CompilerParams(
            dimension_semantics=("parallel",),
            vmem_limit_bytes=int(vmem_budget),
        ),
        cost_estimate=cost,
    )(x_p, Wa, ba)


def _aggregate_call(a_bf, emb_bf, vmem_budget):
    Np = a_bf.shape[0]
    Fp = emb_bf.shape[1]
    TM, TK = _tiles_for(Np)
    cost = pl.CostEstimate(
        flops=int(2 * Np * Np * Fp),
        transcendentals=0,
        bytes_accessed=int(2 * Np * Np + 2 * Np * Fp + 4 * Np * Fp),
    )
    return pl.pallas_call(
        _aggregate_kernel,
        out_shape=jax.ShapeDtypeStruct((Np, Fp), jnp.float32),
        grid=(Np // TM, Np // TK),
        in_specs=[
            pl.BlockSpec((TM, TK), lambda i, k: (i, k)),   # A_norm row/K tile
            pl.BlockSpec((TK, Fp), lambda i, k: (k, 0)),   # x_emb K tile
        ],
        out_specs=pl.BlockSpec((TM, Fp), lambda i, k: (i, 0)),
        scratch_shapes=[pltpu.VMEM((TM, Fp), jnp.float32)],
        compiler_params=pltpu.CompilerParams(
            dimension_semantics=("parallel", "arbitrary"),
            vmem_limit_bytes=int(vmem_budget),
        ),
        cost_estimate=cost,
    )(a_bf, emb_bf)


def _frag_call(m_bf, x_new, W1, b1, W2, b2, vmem_budget):
    Rp, Np = m_bf.shape
    Fp = x_new.shape[1]
    Hp = W1.shape[1]
    vmem = pl.BlockSpec(memory_space=pltpu.MemorySpace.VMEM)
    cost = pl.CostEstimate(
        flops=int(2 * Rp * Np * Fp + 2 * Rp * Fp * Hp + 2 * Rp * Hp * Fp),
        transcendentals=0,
        bytes_accessed=int(
            2 * Rp * Np
            + 4 * (Np * Fp + Fp * Hp + Hp * Fp + Hp + Fp + Rp * Fp)
        ),
    )
    return pl.pallas_call(
        _frag_kernel,
        out_shape=jax.ShapeDtypeStruct((Rp, Fp), jnp.float32),
        in_specs=[vmem] * 6,
        out_specs=vmem,
        compiler_params=pltpu.CompilerParams(vmem_limit_bytes=int(vmem_budget)),
        cost_estimate=cost,
    )(m_bf, x_new, W1, b1, W2, b2)


@functools.partial(jax.jit, static_argnames=("atom_out", "n_frag_rows"))
def _forward(x, Wa, ba, A_bf, M_bf, W1, b1, W2, b2, *, atom_out, n_frag_rows):
    N, atom_in = x.shape
    Np = A_bf.shape[0]
    AIp = Wa.shape[0]
    budget = _vmem_budget_bytes()
    # device-side padding (no per-call host numpy work)
    x_p = jnp.pad(x.astype(jnp.float32), ((0, Np - N), (0, AIp - atom_in)))
    x_emb = _embed_call(x_p, Wa, ba, budget)                 # bf16 [Np, Fp]
    x_new = _aggregate_call(A_bf, x_emb, budget)             # f32  [Np, Fp]
    frags = _frag_call(M_bf, x_new, W1, b1, W2, b2, budget)  # f32  [Rp, Fp]
    return x_new[:N, :atom_out], frags[:n_frag_rows, :atom_out]


# ---------------------- per-model / per-graph preprocessing -------------------
def pad_params(params):
    """Zero-pad weights/biases to lane-dense (multiple-of-128) feature dims."""
    atom_in, atom_out = params["Wa"].shape
    hidden = params["W1"].shape[1]
    AIp, AOp, Hp = _rup(atom_in, 128), _rup(atom_out, 128), _rup(hidden, 128)
    return dict(
        Wa=jnp.asarray(_pad2(params["Wa"], AIp, AOp)),
        ba=jnp.asarray(_pad2(params["ba"], 1, AOp)),
        W1=jnp.asarray(_pad2(params["W1"], AOp, Hp)),
        b1=jnp.asarray(_pad2(params["b1"], 1, Hp)),
        W2=jnp.asarray(_pad2(params["W2"], Hp, AOp)),
        b2=jnp.asarray(_pad2(params["b2"], 1, AOp)),
        atom_in=atom_in, atom_out=atom_out, AIp=AIp, AOp=AOp)


def preprocess_graph(num_atoms, edge_index, frag_index, atom_to_frag_ids):
    """Build constant (per-graph) index/adjacency matrices ONCE, padded, bf16."""
    N = int(num_atoms)
    edge_index = np.asarray(edge_index, np.int64)
    frag_index = np.asarray(frag_index, np.int64)
    atom_to_frag_ids = np.asarray(atom_to_frag_ids, np.int64)

    # add_self_loops
    src = np.concatenate([edge_index[0], np.arange(N)])
    tgt = np.concatenate([edge_index[1], np.arange(N)])

    # GCN normalization: degree computed from `source`, exactly as the module does.
    deg = np.zeros(N, np.float32)
    np.add.at(deg, src, 1.0)
    dis = np.zeros(N, np.float32)
    nz = deg > 0
    dis[nz] = deg[nz] ** -0.5                      # inf -> 0 handling
    norm = dis[src] * dis[tgt]

    # dense normalized adjacency A[t, s] = sum over edges (s -> t) of norm_e
    A = np.zeros((N, N), np.float32)
    np.add.at(A, (tgt, src), norm)

    # one-hot atom -> fragment pooling matrix
    n_frags = int(atom_to_frag_ids.max()) + 1
    S = np.zeros((n_frags, N), np.float32)
    S[atom_to_frag_ids, np.arange(N)] = 1.0

    # fragment-graph adjacency counts.  NOTE: rows = ftgt.max()+1 mirrors the
    # torch scatter_add default; trailing frags with no incoming frag edges
    # get no output rows (same contract as the reference module).
    fsrc, ftgt = frag_index
    n_frag_rows = int(ftgt.max()) + 1
    F_adj = np.zeros((n_frag_rows, n_frags), np.float32)
    np.add.at(F_adj, (ftgt, fsrc), 1.0)

    # compose the two pure-index matrices into one
    M = F_adj @ S                                  # [n_frag_rows, N]

    Np = _pad_atom_rows(N)
    Rp = _rup(max(n_frag_rows, 16), 16)
    # Padding is zero and zero is exact in bf16, so padded rows/cols keep
    # contributing exactly nothing after the bf16 cast.
    return dict(
        A_p=jnp.asarray(_pad2(A, Np, Np)).astype(jnp.bfloat16),
        M_p=jnp.asarray(_pad2(M, Rp, Np)).astype(jnp.bfloat16),
        N=N, Np=Np, n_frag_rows=n_frag_rows, Rp=Rp)


# ------------------------------ forward wrapper --------------------------------
def fragnet_layer(padded_params, graph, x_atoms):
    """Mirrors FragNetLayer.forward outputs.  edge_attr / x_frags inputs and the
    edge_embed / frag_embed / frag_message_mlp / atom_mlp submodules are dead in
    the reference forward (never reach the returned values) and are omitted."""
    p, g = padded_params, graph
    return _forward(
        jnp.asarray(x_atoms, jnp.float32),
        p["Wa"], p["ba"], g["A_p"], g["M_p"],
        p["W1"], p["b1"], p["W2"], p["b2"],
        atom_out=p["atom_out"], n_frag_rows=g["n_frag_rows"])


# --------------------------- numpy reference -----------------------------------
def reference(params, x_atoms, edge_index, atom_to_frag_ids, frag_index):
    p = {k: np.asarray(v) for k, v in params.items()}
    x_atoms = np.asarray(x_atoms, np.float32)
    N = x_atoms.shape[0]
    src = np.concatenate([edge_index[0], np.arange(N)])
    tgt = np.concatenate([edge_index[1], np.arange(N)])
    x_emb = x_atoms @ p["Wa"] + p["ba"][0]
    deg = np.zeros(N, np.float32); np.add.at(deg, src, 1.0)
    dis = np.zeros(N, np.float32); nzm = deg > 0; dis[nzm] = deg[nzm] ** -0.5
    norm = dis[src] * dis[tgt]
    msg = x_emb[src] * norm[:, None]
    x_new = np.zeros((int(tgt.max()) + 1, x_emb.shape[1]), np.float32)
    np.add.at(x_new, tgt, msg)
    nf = int(atom_to_frag_ids.max()) + 1
    xf = np.zeros((nf, x_new.shape[1]), np.float32)
    np.add.at(xf, atom_to_frag_ids, x_new)
    fs, ft = frag_index
    agg = np.zeros((int(ft.max()) + 1, xf.shape[1]), np.float32)
    np.add.at(agg, ft, xf[fs])
    h = np.maximum(agg @ p["W1"] + p["b1"][0], 0.0)
    return x_new, h @ p["W2"] + p["b2"][0]


# ---------------------------------- main ----------------------------------------
if __name__ == "__main__":
    # small, module-consistent sizes
    ATOM_IN, ATOM_OUT = 32, 32
    EDGE_IN = 12                     # matches the self-loop attr width
    N_ATOMS, N_FRAGS = 16, 4

    key = jax.random.PRNGKey(0)
    ks = jax.random.split(key, 10)

    def init_linear(kw, kb, fan_in, fan_out):
        bound = 1.0 / np.sqrt(fan_in)
        W = jax.random.uniform(kw, (fan_in, fan_out), jnp.float32, -bound, bound)
        b = jax.random.uniform(kb, (1, fan_out), jnp.float32, -bound, bound)
        return np.asarray(W), np.asarray(b)

    Wa, ba = init_linear(ks[0], ks[1], ATOM_IN, ATOM_OUT)         # atom_embed
    W1, b1 = init_linear(ks[4], ks[5], ATOM_OUT, 2 * ATOM_OUT)    # frag_mlp[0]
    W2, b2 = init_linear(ks[6], ks[7], 2 * ATOM_OUT, ATOM_OUT)    # frag_mlp[2]
    params = dict(Wa=Wa, ba=ba, W1=W1, b1=b1, W2=W2, b2=b2)

    # deterministic example graph: bidirectional ring over 16 atoms
    x_atoms = np.asarray(jax.random.normal(ks[8], (N_ATOMS, ATOM_IN), jnp.float32))
    src = np.arange(N_ATOMS)
    edge_index = np.stack([
        np.concatenate([src, (src + 1) % N_ATOMS]),
        np.concatenate([(src + 1) % N_ATOMS, src]),
    ]).astype(np.int64)                                            # [2, 32]
    edge_attr = np.asarray(
        jax.random.normal(ks[9], (edge_index.shape[1], EDGE_IN), jnp.float32))
    atom_to_frag_ids = np.repeat(np.arange(N_FRAGS), N_ATOMS // N_FRAGS)  # [16]
    frag_index = np.array([[0, 1, 1, 2, 2, 3],
                           [1, 0, 2, 1, 3, 2]], np.int64)          # [2, 6]
    x_frags = np.zeros((N_FRAGS, ATOM_OUT), np.float32)            # unused by forward
    del edge_attr, x_frags   # dead in the reference forward's returned values

    # one-time preprocessing (hoisted out of the per-call path)
    padded_params = pad_params(params)
    graph = preprocess_graph(N_ATOMS, edge_index, frag_index, atom_to_frag_ids)

    x_atoms_new, x_frags_new = fragnet_layer(padded_params, graph, x_atoms)
    jax.block_until_ready((x_atoms_new, x_frags_new))

    ref_atoms, ref_frags = reference(params, x_atoms, edge_index,
                                     atom_to_frag_ids, frag_index)
    # Tolerance reflects bf16 storage of A_norm / M / x_emb (accumulation is f32).
    np.testing.assert_allclose(np.asarray(x_atoms_new), ref_atoms,
                               rtol=3e-2, atol=3e-2)
    np.testing.assert_allclose(np.asarray(x_frags_new), ref_frags,
                               rtol=3e-2, atol=3e-2)
    print("KERNEL_OK")
</pallas_src>

<mosaic_0001>
module attributes {stable_mosaic.version = 11 : i64} {
  func.func @_frag_kernel(%arg0: memref<16x16xbf16, #tpu.memory_space<vmem>>, %arg1: memref<16x128xf32, #tpu.memory_space<vmem>>, %arg2: memref<128x128xf32, #tpu.memory_space<vmem>>, %arg3: memref<1x128xf32, #tpu.memory_space<vmem>>, %arg4: memref<128x128xf32, #tpu.memory_space<vmem>>, %arg5: memref<1x128xf32, #tpu.memory_space<vmem>>, %arg6: memref<16x128xf32, #tpu.memory_space<vmem>>) attributes {dimension_semantics = [], scalar_prefetch = 0 : i64, scratch_operands = 0 : i64, tpu.core_type = #tpu.core_type<tc>} {
    %c0 = arith.constant 0 : index
    %c0_0 = arith.constant 0 : index
    %0 = vector.load %arg0[%c0, %c0_0] : memref<16x16xbf16, #tpu.memory_space<vmem>>, vector<16x16xbf16>
    %c0_1 = arith.constant 0 : index
    %c0_2 = arith.constant 0 : index
    %1 = vector.load %arg1[%c0_1, %c0_2] : memref<16x128xf32, #tpu.memory_space<vmem>>, vector<16x128xf32>
    %2 = arith.truncf %1 : vector<16x128xf32> to vector<16x128xbf16>
    %cst = arith.constant dense<0.000000e+00> : vector<16x128xf32>
    %3 = tpu.matmul %0, %2, %cst {dimension_numbers = #tpu.dot_dimension_numbers<[1], [0], [0], [1], [0, 0, 1, 1], [], []>} : vector<16x16xbf16>, vector<16x128xbf16>, vector<16x128xf32> -> vector<16x128xf32>
    %c0_3 = arith.constant 0 : index
    %c0_4 = arith.constant 0 : index
    %4 = vector.load %arg2[%c0_3, %c0_4] : memref<128x128xf32, #tpu.memory_space<vmem>>, vector<128x128xf32>
    %cst_5 = arith.constant dense<0.000000e+00> : vector<16x128xf32>
    %5 = tpu.matmul %3, %4, %cst_5 {dimension_numbers = #tpu.dot_dimension_numbers<[1], [0], [0], [1], [0, 0, 1, 1], [], []>} : vector<16x128xf32>, vector<128x128xf32>, vector<16x128xf32> -> vector<16x128xf32>
    %c0_6 = arith.constant 0 : index
    %c0_7 = arith.constant 0 : index
    %6 = vector.load %arg3[%c0_6, %c0_7] : memref<1x128xf32, #tpu.memory_space<vmem>>, vector<1x128xf32>
    %7 = vector.broadcast %6 : vector<1x128xf32> to vector<16x128xf32>
    %8 = arith.addf %5, %7 : vector<16x128xf32>
    %cst_8 = arith.constant 0.000000e+00 : f32
    %9 = vector.broadcast %cst_8 : f32 to vector<16x128xf32>
    %10 = arith.maximumf %8, %9 : vector<16x128xf32>
    %c0_9 = arith.constant 0 : index
    %c0_10 = arith.constant 0 : index
    %11 = vector.load %arg4[%c0_9, %c0_10] : memref<128x128xf32, #tpu.memory_space<vmem>>, vector<128x128xf32>
    %cst_11 = arith.constant dense<0.000000e+00> : vector<16x128xf32>
    %12 = tpu.matmul %10, %11, %cst_11 {dimension_numbers = #tpu.dot_dimension_numbers<[1], [0], [0], [1], [0, 0, 1, 1], [], []>} : vector<16x128xf32>, vector<128x128xf32>, vector<16x128xf32> -> vector<16x128xf32>
    %c0_12 = arith.constant 0 : index
    %c0_13 = arith.constant 0 : index
    %13 = vector.load %arg5[%c0_12, %c0_13] : memref<1x128xf32, #tpu.memory_space<vmem>>, vector<1x128xf32>
    %14 = vector.broadcast %13 : vector<1x128xf32> to vector<16x128xf32>
    %15 = arith.addf %12, %14 : vector<16x128xf32>
    %c0_14 = arith.constant 0 : index
    %c0_15 = arith.constant 0 : index
    %16 = vector.load %arg6[%c0_14, %c0_15] : memref<16x128xf32, #tpu.memory_space<vmem>>, vector<16x128xf32>
    tpu.vector_store %arg6[%c0_14, %c0_15], %15 {strides = array<i32>} : memref<16x128xf32, #tpu.memory_space<vmem>>, vector<16x128xf32>,
    return
  }
}

module attributes {stable_mosaic.version = 11 : i64} {
  func.func @_embed_kernel(%arg0: i32, %arg1: memref<16x128xf32, #tpu.memory_space<vmem>>, %arg2: memref<128x128xf32, #tpu.memory_space<vmem>>, %arg3: memref<1x128xf32, #tpu.memory_space<vmem>>, %arg4: memref<16x128xbf16, #tpu.memory_space<vmem>>) attributes {dimension_semantics = [#tpu.dimension_semantics<parallel>], iteration_bounds = array<i64: 1>, scalar_prefetch = 0 : i64, scratch_operands = 0 : i64, tpu.core_type = #tpu.core_type<tc>, window_params = [{transform_indices = @transform_0, window_bounds = array<i64: 16, 128>}, {pipeline_mode = #tpu.pipeline_mode<synchronous>, transform_indices = @transform_1, window_bounds = array<i64: 128, 128>}, {pipeline_mode = #tpu.pipeline_mode<synchronous>, transform_indices = @transform_2, window_bounds = array<i64: 1, 128>}, {transform_indices = @transform_3, window_bounds = array<i64: 16, 128>}]} {
    %c0 = arith.constant 0 : index
    %c0_0 = arith.constant 0 : index
    %0 = vector.load %arg1[%c0, %c0_0] : memref<16x128xf32, #tpu.memory_space<vmem>>, vector<16x128xf32>
    %c0_1 = arith.constant 0 : index
    %c0_2 = arith.constant 0 : index
    %1 = vector.load %arg2[%c0_1, %c0_2] : memref<128x128xf32, #tpu.memory_space<vmem>>, vector<128x128xf32>
    %cst = arith.constant dense<0.000000e+00> : vector<16x128xf32>
    %2 = tpu.matmul %0, %1, %cst {dimension_numbers = #tpu.dot_dimension_numbers<[1], [0], [0], [1], [0, 0, 1, 1], [], []>} : vector<16x128xf32>, vector<128x128xf32>, vector<16x128xf32> -> vector<16x128xf32>
    %c0_3 = arith.constant 0 : index
    %c0_4 = arith.constant 0 : index
    %3 = vector.load %arg3[%c0_3, %c0_4] : memref<1x128xf32, #tpu.memory_space<vmem>>, vector<1x128xf32>
    %4 = vector.broadcast %3 : vector<1x128xf32> to vector<16x128xf32>
    %5 = arith.addf %2, %4 : vector<16x128xf32>
    %6 = arith.truncf %5 : vector<16x128xf32> to vector<16x128xbf16>
    %c0_5 = arith.constant 0 : index
    %c0_6 = arith.constant 0 : index
    %7 = vector.load %arg4[%c0_5, %c0_6] : memref<16x128xbf16, #tpu.memory_space<vmem>>, vector<16x128xbf16>
    tpu.vector_store %arg4[%c0_5, %c0_6], %6 {strides = array<i32>} : memref<16x128xbf16, #tpu.memory_space<vmem>>, vector<16x128xbf16>,
    return
  }
  func.func @transform_0(%arg0: i32) -> (i32, i32) {
    %c0_i32 = arith.constant 0 : i32
    %c0_i32_0 = arith.constant 0 : i32
    return %arg0, %c0_i32 : i32, i32
  }
  func.func @transform_1(%arg0: i32) -> (i32, i32) {
    %c0_i32 = arith.constant 0 : i32
    %c0_i32_0 = arith.constant 0 : i32
    %c0_i32_1 = arith.constant 0 : i32
    return %c0_i32, %c0_i32_0 : i32, i32
  }
  func.func @transform_2(%arg0: i32) -> (i32, i32) {
    %c0_i32 = arith.constant 0 : i32
    %c0_i32_0 = arith.constant 0 : i32
    %c0_i32_1 = arith.constant 0 : i32
    return %c0_i32, %c0_i32_0 : i32, i32
  }
  func.func @transform_3(%arg0: i32) -> (i32, i32) {
    %c0_i32 = arith.constant 0 : i32
    %c0_i32_0 = arith.constant 0 : i32
    return %arg0, %c0_i32 : i32, i32
  }
}

module attributes {stable_mosaic.version = 11 : i64} {
  func.func @_aggregate_kernel(%arg0: i32, %arg1: i32, %arg2: memref<16x16xbf16, #tpu.memory_space<vmem>>, %arg3: memref<16x128xbf16, #tpu.memory_space<vmem>>, %arg4: memref<16x128xf32, #tpu.memory_space<vmem>>, %arg5: memref<16x128xf32, #tpu.memory_space<vmem>>) attributes {dimension_semantics = [#tpu.dimension_semantics<parallel>, #tpu.dimension_semantics<arbitrary>], iteration_bounds = array<i64: 1, 1>, scalar_prefetch = 0 : i64, scratch_operands = 1 : i64, tpu.core_type = #tpu.core_type<tc>, window_params = [{transform_indices = @transform_0, window_bounds = array<i64: 16, 16>}, {transform_indices = @transform_1, window_bounds = array<i64: 16, 128>}, {transform_indices = @transform_2, window_bounds = array<i64: 16, 128>}]} {
    %c0_i32 = arith.constant 0 : i32
    %0 = arith.cmpi eq, %arg1, %c0_i32 : i32
    %1 = arith.extui %0 : i1 to i32
    %c0_i32_0 = arith.constant 0 : i32
    %2 = arith.cmpi ne, %1, %c0_i32_0 : i32
    scf.if %2 {
      %cst_10 = arith.constant 0.000000e+00 : f32
      %12 = vector.broadcast %cst_10 : f32 to vector<16x128xf32>
      %c0_11 = arith.constant 0 : index
      %c0_12 = arith.constant 0 : index
      %13 = vector.load %arg5[%c0_11, %c0_12] : memref<16x128xf32, #tpu.memory_space<vmem>>, vector<16x128xf32>
      tpu.vector_store %arg5[%c0_11, %c0_12], %12 {strides = array<i32>} : memref<16x128xf32, #tpu.memory_space<vmem>>, vector<16x128xf32>,
    } else {
    }
    %c0 = arith.constant 0 : index
    %c0_1 = arith.constant 0 : index
    %3 = vector.load %arg5[%c0, %c0_1] : memref<16x128xf32, #tpu.memory_space<vmem>>, vector<16x128xf32>
    %c0_2 = arith.constant 0 : index
    %c0_3 = arith.constant 0 : index
    %4 = vector.load %arg2[%c0_2, %c0_3] : memref<16x16xbf16, #tpu.memory_space<vmem>>, vector<16x16xbf16>
    %c0_4 = arith.constant 0 : index
    %c0_5 = arith.constant 0 : index
    %5 = vector.load %arg3[%c0_4, %c0_5] : memref<16x128xbf16, #tpu.memory_space<vmem>>, vector<16x128xbf16>
    %cst = arith.constant dense<0.000000e+00> : vector<16x128xf32>
    %6 = tpu.matmul %4, %5, %cst {dimension_numbers = #tpu.dot_dimension_numbers<[1], [0], [0], [1], [0, 0, 1, 1], [], []>} : vector<16x16xbf16>, vector<16x128xbf16>, vector<16x128xf32> -> vector<16x128xf32>
    %7 = arith.addf %3, %6 : vector<16x128xf32>
    %c0_6 = arith.constant 0 : index
    %c0_7 = arith.constant 0 : index
    %8 = vector.load %arg5[%c0_6, %c0_7] : memref<16x128xf32, #tpu.memory_space<vmem>>, vector<16x128xf32>
    tpu.vector_store %arg5[%c0_6, %c0_7], %7 {strides = array<i32>} : memref<16x128xf32, #tpu.memory_space<vmem>>, vector<16x128xf32>,
    %c0_i32_8 = arith.constant 0 : i32
    %9 = arith.cmpi eq, %arg1, %c0_i32_8 : i32
    %10 = arith.extui %9 : i1 to i32
    %c0_i32_9 = arith.constant 0 : i32
    %11 = arith.cmpi ne, %10, %c0_i32_9 : i32
    scf.if %11 {
      %c0_10 = arith.constant 0 : index
      %c0_11 = arith.constant 0 : index
      %12 = vector.load %arg5[%c0_10, %c0_11] : memref<16x128xf32, #tpu.memory_space<vmem>>, vector<16x128xf32>
      %c0_12 = arith.constant 0 : index
      %c0_13 = arith.constant 0 : index
      %13 = vector.load %arg4[%c0_12, %c0_13] : memref<16x128xf32, #tpu.memory_space<vmem>>, vector<16x128xf32>
      tpu.vector_store %arg4[%c0_12, %c0_13], %12 {strides = array<i32>} : memref<16x128xf32, #tpu.memory_space<vmem>>, vector<16x128xf32>,
    } else {
    }
    return
  }
  func.func @transform_0(%arg0: i32, %arg1: i32) -> (i32, i32) {
    %c0_i32 = arith.constant 0 : i32
    return %arg0, %arg1 : i32, i32
  }
  func.func @transform_1(%arg0: i32, %arg1: i32) -> (i32, i32) {
    %c0_i32 = arith.constant 0 : i32
    %c0_i32_0 = arith.constant 0 : i32
    return %arg1, %c0_i32 : i32, i32
  }
  func.func @transform_2(%arg0: i32, %arg1: i32) -> (i32, i32) {
    %c0_i32 = arith.constant 0 : i32
    %c0_i32_0 = arith.constant 0 : i32
    return %arg0, %c0_i32 : i32, i32
  }
}

</mosaic_0001>

<llo_original>
// kernel: _forward.4
$region0: #{_forward.4}
  #allocation0 [shape = 'u32[]', space=smem, size = 0x4, offset = 0x4, fixed_abs, tag = 'smem constant byte address 0x4 - core index']
  #allocation1 [shape = 'u32[144,128]{1,0:T(1,128)}', space=vmem, size = 0x12000, scoped, tag = 'internal scratch']
  #allocation2 [shape = 'f32[16,128]{1,0:T(8,128)}', space=vmem, size = 0x2000, scoped, tag = 'scratch operand']
  %s0 = inlined_call_operand.vmem [shape: bf16[16,16], index: 0, kind: input, shape index: {}]
  %s1 = inlined_call_operand.vmem [shape: bf16[16,128], index: 1, kind: input, shape index: {}]
  %s2 = inlined_call_operand.vmem [shape: f32[16,128], index: 2, kind: output, shape index: {}]
  %s3 = sld [smem:[#allocation0]]
  $region26: #{_forward.4} parent=0
    _
  %s5 = ssub.s32 1, %s3
  %s6 = scalar_select 0, %s5, %s3
  // Predicated region
  $region2: #{_forward.4} parent=0 // pred_check
    _
  $region3: #{_forward.4} parent=0 // pred_check_branch
    %8 = sbr.rel (0) target = $region5
  $region4: #{_forward.4} parent=0 // pred_region
    _
  $region5: #{_forward.4} parent=0 // pred_fallthru
    _
  // Predicated region
  $region6: #{_forward.4} parent=0 // pred_check
    _
  $region7: #{_forward.4} parent=0 // pred_check_branch
    %10 = sbr.rel (0) target = $region9
  $region8: #{_forward.4} parent=0 // pred_region
    _
  $region9: #{_forward.4} parent=0 // pred_fallthru
    _
  %p12 = scmp.eq.s32.totalorder 0, 0
  // Predicated region
  $region10: #{_forward.4} parent=0 // pred_check
    %p13 = pneg %p12
  $region11: #{_forward.4} parent=0 // pred_check_branch
    %15 = sbr.rel (%p13) target = $region13
  $region12: #{_forward.4} parent=0 // pred_region
    %16 = vst [vmem:[#allocation2] sm:$0xff] 0.0
    %17 = vst [vmem:[#allocation2 + $0x8] sm:$0xff] 0.0
  $region13: #{_forward.4} parent=0 // pred_fallthru
    _
  %v18 = vld [vmem:[#allocation2] sm:$0xff]
  %v19 = vld [vmem:[#allocation2 + $0x8] sm:$0xff]
  %v20 = vld [vmem:[%s0] sm:$0xf]
  %v21 = vld [vmem:[%s0 + $0x4] sm:$0xf]
  %v22 = vld [vmem:[%s1] sm:$0xf]
  %v23 = vld [vmem:[%s1 + $0x4] sm:$0xf]
  %v26 = vunpack.c.l.b16 %v20
  %v27 = vunpack.c.l.b16 %v21
  %v28 = vpack.c.b16 %v27, %v26
  %v31 = vunpack.c.l.b16 %v22
  %v32 = vunpack.c.l.b16 %v23
  %v33 = vpack.c.b16 %v32, %v31
  %vm35 = vcmask 130048
  %v37 = vsel %vm35, %v28, 0
  %39 = vmatprep.subr.bf16.mxu0 0
  %40 = vmatpush1.bf16.msra.mxu0 %v33
  %41 = vmatprep.subr.bf16.mxu0 0
  %42 = vmatpush1.bf16.msra.mxu0 0
  %43 = vmatprep.subr.bf16.mxu0 0
  %44 = vmatpush1.bf16.msra.mxu0 0
  %45 = vmatprep.subr.bf16.mxu0 0
  %46 = vmatpush1.bf16.msra.mxu0 0
  %47 = vmatprep.subr.bf16.mxu0 0
  %48 = vmatpush1.bf16.msra.mxu0 0
  %49 = vmatprep.subr.bf16.mxu0 0
  %50 = vmatpush1.bf16.msra.mxu0 0
  %51 = vmatprep.subr.bf16.mxu0 0
  %52 = vmatpush1.bf16.msra.mxu0 0
  %53 = vmatprep.subr.bf16.mxu0 0
  %54 = vmatpush1.bf16.msra.mxu0 0
  %55 = vmatprep.subr.bf16.mxu0 0
  %56 = vmatpush1.bf16.msra.mxu0 0
  %57 = vmatprep.subr.bf16.mxu0 0
  %58 = vmatpush1.bf16.msra.mxu0 0
  %59 = vmatprep.subr.bf16.mxu0 0
  %60 = vmatpush1.bf16.msra.mxu0 0
  %61 = vmatprep.subr.bf16.mxu0 0
  %62 = vmatpush1.bf16.msra.mxu0 0
  %63 = vmatprep.subr.bf16.mxu0 0
  %64 = vmatpush1.bf16.msra.mxu0 0
  %65 = vmatprep.subr.bf16.mxu0 0
  %66 = vmatpush1.bf16.msra.mxu0 0
  %67 = vmatprep.subr.bf16.mxu0 0
  %68 = vmatpush1.bf16.msra.mxu0 0
  %69 = vmatprep.subr.bf16.mxu0 0
  %70 = vmatpush1.bf16.msra.mxu0 0
  %71 = vmatprep.mubr.bf16.mxu0 0
  %72 = vmatmul.mubr.bf16.gmra.mrb[0].mxu0 %v37
  %v73 = vpop.f32.mrb[0].mxu0
  %v74 = vadd.f32 0.0, %v73
  %v75 = vpop.f32.mrb[0].mxu0
  %v76 = vpop.f32.mrb[0].mxu0
  %v77 = vadd.f32 0.0, %v76
  %v78 = vpop.f32.mrb[0].mxu0
  %79 = vdwg.mxu0
  %v80 = vadd.f32 %v18, %v74
  %v81 = vadd.f32 %v19, %v77
  %82 = vst [vmem:[#allocation2] sm:$0xff] %v80
  %83 = vst [vmem:[#allocation2 + $0x8] sm:$0xff] %v81
  // Predicated region
  $region14: #{_forward.4} parent=0 // pred_check
    %p84 = pneg %p12
  $region15: #{_forward.4} parent=0 // pred_check_branch
    %86 = sbr.rel (%p84) target = $region17
  $region16: #{_forward.4} parent=0 // pred_region
    %v87 = vld [vmem:[#allocation2] sm:$0xff]
    %v88 = vld [vmem:[#allocation2 + $0x8] sm:$0xff]
    %89 = vst [vmem:[%s2] sm:$0xff] %v87
    %90 = vst [vmem:[%s2 + $0x8] sm:$0xff] %v88
  $region17: #{_forward.4} parent=0 // pred_fallthru
    _
  // Predicated region
  $region18: #{_forward.4} parent=0 // pred_check
    _
  $region19: #{_forward.4} parent=0 // pred_check_branch
    %92 = sbr.rel (0) target = $region21
  $region20: #{_forward.4} parent=0 // pred_region
    _
  $region21: #{_forward.4} parent=0 // pred_fallthru
    _
  // Predicated region
  $region22: #{_forward.4} parent=0 // pred_check
    _
  $region23: #{_forward.4} parent=0 // pred_check_branch
    %94 = sbr.rel (0) target = $region25
  $region24: #{_forward.4} parent=0 // pred_region
    _
  $region25: #{_forward.4} parent=0 // pred_fallthru
    _

// kernel: _forward.5
$region0: #{_forward.5}
  #allocation0 [shape = 'u32[]', space=smem, size = 0x4, offset = 0x4, fixed_abs, tag = 'smem constant byte address 0x4 - core index']
  #allocation1 [shape = 'u32[144,128]{1,0:T(1,128)}', space=vmem, size = 0x12000, scoped, tag = 'internal scratch']
  %s0 = inlined_call_operand.vmem [shape: bf16[16,16], index: 0, kind: input, shape index: {}]
  %s1 = inlined_call_operand.vmem [shape: f32[16,128], index: 1, kind: input, shape index: {}]
  %s2 = inlined_call_operand.vmem [shape: f32[128,128], index: 2, kind: input, shape index: {}]
  %s3 = inlined_call_operand.vmem [shape: f32[1,128], index: 3, kind: input, shape index: {}]
  %s4 = inlined_call_operand.hbm [shape: f32[128,128], index: 4, kind: input, shape index: {}]
  %s5 = inlined_call_operand.vmem [shape: f32[1,128], index: 5, kind: input, shape index: {}]
  %s6 = inlined_call_operand.vmem [shape: f32[16,128], index: 6, kind: output, shape index: {}]
  %s7 = sld [smem:[#allocation0]]
  $region38: #{_forward.5} parent=0
    _
  %s9 = ssub.s32 1, %s7
  %s10 = scalar_select 0, %s9, %s7
  $region1: #{_forward.5} parent=0
    #allocation2 [shape = 'u8[65536]{0}', space=vmem, size = 0x10000, scoped, tag = 'input window, operand 4, single buffered']
    #allocation3 [shape = 's32[1]{0}', space=sflag, size = 0x4, scoped, tag = 'scoped memory for _forward.5']
    %11 = vsyncpa [#allocation3], 0
    // Predicated region
    $region2: #{_forward.5} parent=1 // pred_check
      _
    $region3: #{_forward.5} parent=1 // pred_check_branch
      %13 = sbr.rel (0) target = $region5
    $region4: #{_forward.5} parent=1 // pred_region
      _
    $region5: #{_forward.5} parent=1 // pred_fallthru
      _
    // Predicated region
    $region6: #{_forward.5} parent=1 // pred_check
      _
    $region7: #{_forward.5} parent=1 // pred_check_branch
      %15 = sbr.rel (0) target = $region9
    $region8: #{_forward.5} parent=1 // pred_region
      _
    $region9: #{_forward.5} parent=1 // pred_fallthru
      _
    // Predicated region
    $region10: #{_forward.5} parent=1 // pred_check
      _
    $region11: #{_forward.5} parent=1 // pred_check_branch
      %17 = sbr.rel (0) target = $region13
    $region12: #{_forward.5} parent=1 // pred_region
      _
    $region13: #{_forward.5} parent=1 // pred_fallthru
      _
    // Predicated region
    $region14: #{_forward.5} parent=1 // pred_check
      _
    $region15: #{_forward.5} parent=1 // pred_check_branch
      %19 = sbr.rel (0) target = $region17
    $region16: #{_forward.5} parent=1 // pred_region
      _
    $region17: #{_forward.5} parent=1 // pred_fallthru
      _
    // Predicated region
    $region18: #{_forward.5} parent=1 // pred_check
      _
    $region19: #{_forward.5} parent=1 // pred_check_branch
      %21 = sbr.rel (0) target = $region21
    $region20: #{_forward.5} parent=1 // pred_region
      %s23 = ssub.s32 2048, 2048
      %24 = vsyncadd [#allocation3], %s23
      %s25 = sshll.u32 [#allocation2], 4
      %s26 = int_to_ptr.vmem [resolvable:$true] %s25
      %31 = dma.hbm_to_vmem [thread:$0]  %s4, 2048, %s26, [#allocation3], 128, 128, 8
    $region21: #{_forward.5} parent=1 // pred_fallthru
      _
    // Predicated region
    $region22: #{_forward.5} parent=1 // pred_check
      _
    $region23: #{_forward.5} parent=1 // pred_check_branch
      %33 = sbr.rel (0) target = $region25
    $region24: #{_forward.5} parent=1 // pred_region
      _
    $region25: #{_forward.5} parent=1 // pred_fallthru
      _
    // Predicated region
    $region26: #{_forward.5} parent=1 // pred_check
      _
    $region27: #{_forward.5} parent=1 // pred_check_branch
      %35 = sbr.rel (0) target = $region29
    $region28: #{_forward.5} parent=1 // pred_region
      %36 = dma.done [#allocation3], 2048
    $region29: #{_forward.5} parent=1 // pred_fallthru
      _
    %v38 = vld [vmem:[%s0] sm:$0xf]
    %v39 = vld [vmem:[%s0 + $0x4] sm:$0xf]
    %v40 = vld [vmem:[%s1] sm:$0xff]
    %v41 = vld [vmem:[%s1 + $0x8] sm:$0xff]
    %v42 = vpack.c.bf16 %v41, %v40
    %v45 = vunpack.c.l.b16 %v38
    %v46 = vunpack.c.l.b16 %v39
    %v47 = vpack.c.b16 %v46, %v45
    %vm48 = vcmask 130048
    %v50 = vsel %vm48, %v47, 0
    %52 = vmatprep.subr.bf16.mxu0 0
    %53 = vmatpush1.bf16.msra.mxu0 %v42
    %54 = vmatprep.subr.bf16.mxu0 0
    %55 = vmatpush1.bf16.msra.mxu0 0
    %56 = vmatprep.subr.bf16.mxu0 0
    %57 = vmatpush1.bf16.msra.mxu0 0
    %58 = vmatprep.subr.bf16.mxu0 0
    %59 = vmatpush1.bf16.msra.mxu0 0
    %60 = vmatprep.subr.bf16.mxu0 0
    %61 = vmatpush1.bf16.msra.mxu0 0
    %62 = vmatprep.subr.bf16.mxu0 0
    %63 = vmatpush1.bf16.msra.mxu0 0
    %64 = vmatprep.subr.bf16.mxu0 0
    %65 = vmatpush1.bf16.msra.mxu0 0
    %66 = vmatprep.subr.bf16.mxu0 0
    %67 = vmatpush1.bf16.msra.mxu0 0
    %68 = vmatprep.subr.bf16.mxu0 0
    %69 = vmatpush1.bf16.msra.mxu0 0
    %70 = vmatprep.subr.bf16.mxu0 0
    %71 = vmatpush1.bf16.msra.mxu0 0
    %72 = vmatprep.subr.bf16.mxu0 0
    %73 = vmatpush1.bf16.msra.mxu0 0
    %74 = vmatprep.subr.bf16.mxu0 0
    %75 = vmatpush1.bf16.msra.mxu0 0
    %76 = vmatprep.subr.bf16.mxu0 0
    %77 = vmatpush1.bf16.msra.mxu0 0
    %78 = vmatprep.subr.bf16.mxu0 0
    %79 = vmatpush1.bf16.msra.mxu0 0
    %80 = vmatprep.subr.bf16.mxu0 0
    %81 = vmatpush1.bf16.msra.mxu0 0
    %82 = vmatprep.subr.bf16.mxu0 0
    %83 = vmatpush1.bf16.msra.mxu0 0
    %84 = vmatprep.mubr.bf16.mxu0 0
    %85 = vmatmul.mubr.bf16.gmra.mrb[0].mxu0 %v50
    %v86 = vpop.f32.mrb[0].mxu0
    %v87 = vadd.f32 0.0, %v86
    %v88 = vpop.f32.mrb[0].mxu0
    %v89 = vpop.f32.mrb[0].mxu0
    %v90 = vadd.f32 0.0, %v89
    %v91 = vpop.f32.mrb[0].mxu0
    %92 = vdwg.mxu0
    %v93 = vld [vmem:[%s2] sm:$0xff]
    %v94 = vld [vmem:[%s2 + $0x8] sm:$0xff]
    %v95 = vld [vmem:[%s2 + $0x10] sm:$0xff]
    %v96 = vld [vmem:[%s2 + $0x18] sm:$0xff]
    %v97 = vld [vmem:[%s2 + $0x20] sm:$0xff]
    %v98 = vld [vmem:[%s2 + $0x28] sm:$0xff]
    %v99 = vld [vmem:[%s2 + $0x30] sm:$0xff]
    %v100 = vld [vmem:[%s2 + $0x38] sm:$0xff]
    %v101 = vld [vmem:[%s2 + $0x40] sm:$0xff]
    %v102 = vld [vmem:[%s2 + $0x48] sm:$0xff]
    %v103 = vld [vmem:[%s2 + $0x50] sm:$0xff]
    %v104 = vld [vmem:[%s2 + $0x58] sm:$0xff]
    %v105 = vld [vmem:[%s2 + $0x60] sm:$0xff]
    %v106 = vld [vmem:[%s2 + $0x68] sm:$0xff]
    %v107 = vld [vmem:[%s2 + $0x70] sm:$0xff]
    %v108 = vld [vmem:[%s2 + $0x78] sm:$0xff]
    %v109 = vld [vmem:[%s3] sm:$0x1]
    %v111 = vlaneseq
    %v112 = vshrl.u32 %v111, 7
    %v113 = vsub.s32 0, %v112
    %v114 = vrot.slane %v109, %v113
    %116 = vmatprep.subr.mxu0 0.0
    %117 = vmatpush1.msra.mxu0 %v93
    %118 = vmatprep.subr.mxu0 0.0
    %119 = vmatpush1.msra.mxu0 %v94
    %120 = vmatprep.subr.mxu0 0.0
    %121 = vmatpush1.msra.mxu0 %v95
    %122 = vmatprep.subr.mxu0 0.0
    %123 = vmatpush1.msra.mxu0 %v96
    %124 = vmatprep.subr.mxu0 0.0
    %125 = vmatpush1.msra.mxu0 %v97
    %126 = vmatprep.subr.mxu0 0.0
    %127 = vmatpush1.msra.mxu0 %v98
    %128 = vmatprep.subr.mxu0 0.0
    %129 = vmatpush1.msra.mxu0 %v99
    %130 = vmatprep.subr.mxu0 0.0
    %131 = vmatpush1.msra.mxu0 %v100
    %132 = vmatprep.subr.mxu0 0.0
    %133 = vmatpush1.msra.mxu0 %v101
    %134 = vmatprep.subr.mxu0 0.0
    %135 = vmatpush1.msra.mxu0 %v102
    %136 = vmatprep.subr.mxu0 0.0
    %137 = vmatpush1.msra.mxu0 %v103
    %138 = vmatprep.subr.mxu0 0.0
    %139 = vmatpush1.msra.mxu0 %v104
    %140 = vmatprep.subr.mxu0 0.0
    %141 = vmatpush1.msra.mxu0 %v105
    %142 = vmatprep.subr.mxu0 0.0
    %143 = vmatpush1.msra.mxu0 %v106
    %144 = vmatprep.subr.mxu0 0.0
    %145 = vmatpush1.msra.mxu0 %v107
    %146 = vmatprep.subr.mxu0 0.0
    %147 = vmatpush1.msra.mxu0 %v108
    %148 = vmatprep.subr.mxu0 0.0
    %149 = vmatpush1.msra.mxu0 0.0
    %150 = vmatprep.subr.mxu0 0.0
    %151 = vmatpush1.msra.mxu0 0.0
    %152 = vmatprep.subr.mxu0 0.0
    %153 = vmatpush1.msra.mxu0 0.0
    %154 = vmatprep.subr.mxu0 0.0
    %155 = vmatpush1.msra.mxu0 0.0
    %156 = vmatprep.subr.mxu0 0.0
    %157 = vmatpush1.msra.mxu0 0.0
    %158 = vmatprep.subr.mxu0 0.0
    %159 = vmatpush1.msra.mxu0 0.0
    %160 = vmatprep.subr.mxu0 0.0
    %161 = vmatpush1.msra.mxu0 0.0
    %162 = vmatprep.subr.mxu0 0.0
    %163 = vmatpush1.msra.mxu0 0.0
    %164 = vmatprep.subr.mxu0 0.0
    %165 = vmatpush1.msra.mxu0 0.0
    %166 = vmatprep.subr.mxu0 0.0
    %167 = vmatpush1.msra.mxu0 0.0
    %168 = vmatprep.subr.mxu0 0.0
    %169 = vmatpush1.msra.mxu0 0.0
    %170 = vmatprep.subr.mxu0 0.0
    %171 = vmatpush1.msra.mxu0 0.0
    %172 = vmatprep.subr.mxu0 0.0
    %173 = vmatpush1.msra.mxu0 0.0
    %174 = vmatprep.subr.mxu0 0.0
    %175 = vmatpush1.msra.mxu0 0.0
    %176 = vmatprep.subr.mxu0 0.0
    %177 = vmatpush1.msra.mxu0 0.0
    %178 = vmatprep.subr.mxu0 0.0
    %179 = vmatpush1.msra.mxu0 0.0
    %180 = vmatprep.mubr.f32.mxu0 0.0
    %181 = vmatmul.mubr.f32.gmra.mrb[0].mxu0 %v87
    %v182 = vpop.f32.mrb[0].mxu0
    %v183 = vadd.f32 %v114, %v182
    %v184 = vpop.f32.mrb[0].mxu0
    %185 = vmatprep.mubr.f32.mxu0 0.0
    %186 = vmatmul.mubr.f32.gmra.mrb[0].mxu0 %v90
    %v187 = vpop.f32.mrb[0].mxu0
    %v188 = vadd.f32 %v114, %v187
    %v189 = vpop.f32.mrb[0].mxu0
    %190 = vdwg.mxu0
    %v191 = vmax.f32 %v183, 0.0
    %v192 = vmax.f32 %v188, 0.0
    %v193 = vld [vmem:[#allocation2] sm:$0xff]
    %v194 = vld [vmem:[#allocation2 + $0x8] sm:$0xff]
    %v195 = vld [vmem:[#allocation2 + $0x10] sm:$0xff]
    %v196 = vld [vmem:[#allocation2 + $0x18] sm:$0xff]
    %v197 = vld [vmem:[#allocation2 + $0x20] sm:$0xff]
    %v198 = vld [vmem:[#allocation2 + $0x28] sm:$0xff]
    %v199 = vld [vmem:[#allocation2 + $0x30] sm:$0xff]
    %v200 = vld [vmem:[#allocation2 + $0x38] sm:$0xff]
    %v201 = vld [vmem:[#allocation2 + $0x40] sm:$0xff]
    %v202 = vld [vmem:[#allocation2 + $0x48] sm:$0xff]
    %v203 = vld [vmem:[#allocation2 + $0x50] sm:$0xff]
    %v204 = vld [vmem:[#allocation2 + $0x58] sm:$0xff]
    %v205 = vld [vmem:[#allocation2 + $0x60] sm:$0xff]
    %v206 = vld [vmem:[#allocation2 + $0x68] sm:$0xff]
    %v207 = vld [vmem:[#allocation2 + $0x70] sm:$0xff]
    %v208 = vld [vmem:[#allocation2 + $0x78] sm:$0xff]
    %v209 = vld [vmem:[%s5] sm:$0x1]
    %v211 = vlaneseq
    %v212 = vshrl.u32 %v211, 7
    %v213 = vsub.s32 0, %v212
    %v214 = vrot.slane %v209, %v213
    %216 = vmatprep.subr.mxu0 0.0
    %217 = vmatpush1.msra.mxu0 %v193
    %218 = vmatprep.subr.mxu0 0.0
    %219 = vmatpush1.msra.mxu0 %v194
    %220 = vmatprep.subr.mxu0 0.0
    %221 = vmatpush1.msra.mxu0 %v195
    %222 = vmatprep.subr.mxu0 0.0
    %223 = vmatpush1.msra.mxu0 %v196
    %224 = vmatprep.subr.mxu0 0.0
    %225 = vmatpush1.msra.mxu0 %v197
    %226 = vmatprep.subr.mxu0 0.0
    %227 = vmatpush1.msra.mxu0 %v198
    %228 = vmatprep.subr.mxu0 0.0
    %229 = vmatpush1.msra.mxu0 %v199
    %230 = vmatprep.subr.mxu0 0.0
    %231 = vmatpush1.msra.mxu0 %v200
    %232 = vmatprep.subr.mxu0 0.0
    %233 = vmatpush1.msra.mxu0 %v201
    %234 = vmatprep.subr.mxu0 0.0
    %235 = vmatpush1.msra.mxu0 %v202
    %236 = vmatprep.subr.mxu0 0.0
    %237 = vmatpush1.msra.mxu0 %v203
    %238 = vmatprep.subr.mxu0 0.0
    %239 = vmatpush1.msra.mxu0 %v204
    %240 = vmatprep.subr.mxu0 0.0
    %241 = vmatpush1.msra.mxu0 %v205
    %242 = vmatprep.subr.mxu0 0.0
    %243 = vmatpush1.msra.mxu0 %v206
    %244 = vmatprep.subr.mxu0 0.0
    %245 = vmatpush1.msra.mxu0 %v207
    %246 = vmatprep.subr.mxu0 0.0
    %247 = vmatpush1.msra.mxu0 %v208
    %248 = vmatprep.subr.mxu0 0.0
    %249 = vmatpush1.msra.mxu0 0.0
    %250 = vmatprep.subr.mxu0 0.0
    %251 = vmatpush1.msra.mxu0 0.0
    %252 = vmatprep.subr.mxu0 0.0
    %253 = vmatpush1.msra.mxu0 0.0
    %254 = vmatprep.subr.mxu0 0.0
    %255 = vmatpush1.msra.mxu0 0.0
    %256 = vmatprep.subr.mxu0 0.0
    %257 = vmatpush1.msra.mxu0 0.0
    %258 = vmatprep.subr.mxu0 0.0
    %259 = vmatpush1.msra.mxu0 0.0
    %260 = vmatprep.subr.mxu0 0.0
    %261 = vmatpush1.msra.mxu0 0.0
    %262 = vmatprep.subr.mxu0 0.0
    %263 = vmatpush1.msra.mxu0 0.0
    %264 = vmatprep.subr.mxu0 0.0
    %265 = vmatpush1.msra.mxu0 0.0
    %266 = vmatprep.subr.mxu0 0.0
    %267 = vmatpush1.msra.mxu0 0.0
    %268 = vmatprep.subr.mxu0 0.0
    %269 = vmatpush1.msra.mxu0 0.0
    %270 = vmatprep.subr.mxu0 0.0
    %271 = vmatpush1.msra.mxu0 0.0
    %272 = vmatprep.subr.mxu0 0.0
    %273 = vmatpush1.msra.mxu0 0.0
    %274 = vmatprep.subr.mxu0 0.0
    %275 = vmatpush1.msra.mxu0 0.0
    %276 = vmatprep.subr.mxu0 0.0
    %277 = vmatpush1.msra.mxu0 0.0
    %278 = vmatprep.subr.mxu0 0.0
    %279 = vmatpush1.msra.mxu0 0.0
    %280 = vmatprep.mubr.f32.mxu0 0.0
    %281 = vmatmul.mubr.f32.gmra.mrb[0].mxu0 %v191
    %v282 = vpop.f32.mrb[0].mxu0
    %v283 = vadd.f32 %v214, %v282
    %v284 = vpop.f32.mrb[0].mxu0
    %285 = vmatprep.mubr.f32.mxu0 0.0
    %286 = vmatmul.mubr.f32.gmra.mrb[0].mxu0 %v192
    %v287 = vpop.f32.mrb[0].mxu0
    %v288 = vadd.f32 %v214, %v287
    %v289 = vpop.f32.mrb[0].mxu0
    %290 = vdwg.mxu0
    %291 = vst [vmem:[%s6] sm:$0xff] %v283
    %292 = vst [vmem:[%s6 + $0x8] sm:$0xff] %v288
    // Predicated region
    $region30: #{_forward.5} parent=1 // pred_check
      _
    $region31: #{_forward.5} parent=1 // pred_check_branch
      %294 = sbr.rel (0) target = $region33
    $region32: #{_forward.5} parent=1 // pred_region
      _
    $region33: #{_forward.5} parent=1 // pred_fallthru
      _
    // Predicated region
    $region34: #{_forward.5} parent=1 // pred_check
      _
    $region35: #{_forward.5} parent=1 // pred_check_branch
      %296 = sbr.rel (0) target = $region37
    $region36: #{_forward.5} parent=1 // pred_region
      _
    $region37: #{_forward.5} parent=1 // pred_fallthru
      _
    %297 = vsyncpa [#allocation3], 1

// kernel: _forward.3
$region0: #{_forward.3}
  #allocation0 [shape = 'u32[]', space=smem, size = 0x4, offset = 0x4, fixed_abs, tag = 'smem constant byte address 0x4 - core index']
  #allocation1 [shape = 'u32[144,128]{1,0:T(1,128)}', space=vmem, size = 0x12000, scoped, tag = 'internal scratch']
  %s0 = inlined_call_operand.vmem [shape: f32[16,128], index: 0, kind: input, shape index: {}]
  %s1 = inlined_call_operand.hbm [shape: f32[128,128], index: 1, kind: input, shape index: {}]
  %s2 = inlined_call_operand.hbm [shape: f32[1,128], index: 2, kind: input, shape index: {}]
  %s3 = inlined_call_operand.vmem [shape: bf16[16,128], index: 3, kind: output, shape index: {}]
  %s4 = sld [smem:[#allocation0]]
  $region30: #{_forward.3} parent=0
    _
  %s6 = ssub.s32 1, %s4
  %s7 = scalar_select 0, %s6, %s4
  $region1: #{_forward.3} parent=0
    #allocation2 [shape = 'u8[65536]{0}', space=vmem, size = 0x10000, scoped, tag = 'input window, operand 1, single buffered']
    #allocation3 [shape = 's32[1]{0}', space=sflag, size = 0x4, scoped, tag = 'scoped memory for _forward.3']
    #allocation4 [shape = 'u8[512]{0}', space=vmem, size = 0x400, scoped, tag = 'input window, operand 2, single buffered']
    #allocation5 [shape = 's32[1]{0}', space=sflag, size = 0x4, scoped, tag = 'scoped memory for _forward.3']
    %8 = vsyncpa [#allocation3], 0
    %9 = vsyncpa [#allocation5], 0
    // Predicated region
    $region2: #{_forward.3} parent=1 // pred_check
      _
    $region3: #{_forward.3} parent=1 // pred_check_branch
      %11 = sbr.rel (0) target = $region5
    $region4: #{_forward.3} parent=1 // pred_region
      _
    $region5: #{_forward.3} parent=1 // pred_fallthru
      _
    // Predicated region
    $region6: #{_forward.3} parent=1 // pred_check
      _
    $region7: #{_forward.3} parent=1 // pred_check_branch
      %13 = sbr.rel (0) target = $region9
    $region8: #{_forward.3} parent=1 // pred_region
      %s15 = ssub.s32 2048, 2048
      %16 = vsyncadd [#allocation3], %s15
      %s17 = sshll.u32 [#allocation2], 4
      %s18 = int_to_ptr.vmem [resolvable:$true] %s17
      %23 = dma.hbm_to_vmem [thread:$0]  %s1, 2048, %s18, [#allocation3], 128, 128, 8
    $region9: #{_forward.3} parent=1 // pred_fallthru
      _
    // Predicated region
    $region10: #{_forward.3} parent=1 // pred_check
      _
    $region11: #{_forward.3} parent=1 // pred_check_branch
      %25 = sbr.rel (0) target = $region13
    $region12: #{_forward.3} parent=1 // pred_region
      %s27 = ssub.s32 16, 16
      %28 = vsyncadd [#allocation5], %s27
      %s30 = sshll.u32 [#allocation4], 4
      %s31 = int_to_ptr.vmem [resolvable:$true] %s30
      %33 = dma.hbm_to_vmem [thread:$0]  %s2, 16, %s31, [#allocation5]
    $region13: #{_forward.3} parent=1 // pred_fallthru
      _
    // Predicated region
    $region14: #{_forward.3} parent=1 // pred_check
      _
    $region15: #{_forward.3} parent=1 // pred_check_branch
      %35 = sbr.rel (0) target = $region17
    $region16: #{_forward.3} parent=1 // pred_region
      %36 = dma.done [#allocation3], 2048
    $region17: #{_forward.3} parent=1 // pred_fallthru
      _
    // Predicated region
    $region18: #{_forward.3} parent=1 // pred_check
      _
    $region19: #{_forward.3} parent=1 // pred_check_branch
      %38 = sbr.rel (0) target = $region21
    $region20: #{_forward.3} parent=1 // pred_region
      %39 = dma.done [#allocation5], 16
    $region21: #{_forward.3} parent=1 // pred_fallthru
      _
    %v40 = vld [vmem:[%s0] sm:$0xff]
    %v41 = vld [vmem:[%s0 + $0x8] sm:$0xff]
    %v42 = vld [vmem:[#allocation2] sm:$0xff]
    %v43 = vld [vmem:[#allocation2 + $0x8] sm:$0xff]
    %v44 = vld [vmem:[#allocation2 + $0x10] sm:$0xff]
    %v45 = vld [vmem:[#allocation2 + $0x18] sm:$0xff]
    %v46 = vld [vmem:[#allocation2 + $0x20] sm:$0xff]
    %v47 = vld [vmem:[#allocation2 + $0x28] sm:$0xff]
    %v48 = vld [vmem:[#allocation2 + $0x30] sm:$0xff]
    %v49 = vld [vmem:[#allocation2 + $0x38] sm:$0xff]
    %v50 = vld [vmem:[#allocation2 + $0x40] sm:$0xff]
    %v51 = vld [vmem:[#allocation2 + $0x48] sm:$0xff]
    %v52 = vld [vmem:[#allocation2 + $0x50] sm:$0xff]
    %v53 = vld [vmem:[#allocation2 + $0x58] sm:$0xff]
    %v54 = vld [vmem:[#allocation2 + $0x60] sm:$0xff]
    %v55 = vld [vmem:[#allocation2 + $0x68] sm:$0xff]
    %v56 = vld [vmem:[#allocation2 + $0x70] sm:$0xff]
    %v57 = vld [vmem:[#allocation2 + $0x78] sm:$0xff]
    %v58 = vld [vmem:[#allocation4] sm:$0x1]
    %v60 = vlaneseq
    %v61 = vshrl.u32 %v60, 7
    %v62 = vsub.s32 0, %v61
    %v63 = vrot.slane %v58, %v62
    %65 = vmatprep.subr.mxu0 0.0
    %66 = vmatpush1.msra.mxu0 %v42
    %67 = vmatprep.subr.mxu0 0.0
    %68 = vmatpush1.msra.mxu0 %v43
    %69 = vmatprep.subr.mxu0 0.0
    %70 = vmatpush1.msra.mxu0 %v44
    %71 = vmatprep.subr.mxu0 0.0
    %72 = vmatpush1.msra.mxu0 %v45
    %73 = vmatprep.subr.mxu0 0.0
    %74 = vmatpush1.msra.mxu0 %v46
    %75 = vmatprep.subr.mxu0 0.0
    %76 = vmatpush1.msra.mxu0 %v47
    %77 = vmatprep.subr.mxu0 0.0
    %78 = vmatpush1.msra.mxu0 %v48
    %79 = vmatprep.subr.mxu0 0.0
    %80 = vmatpush1.msra.mxu0 %v49
    %81 = vmatprep.subr.mxu0 0.0
    %82 = vmatpush1.msra.mxu0 %v50
    %83 = vmatprep.subr.mxu0 0.0
    %84 = vmatpush1.msra.mxu0 %v51
    %85 = vmatprep.subr.mxu0 0.0
    %86 = vmatpush1.msra.mxu0 %v52
    %87 = vmatprep.subr.mxu0 0.0
    %88 = vmatpush1.msra.mxu0 %v53
    %89 = vmatprep.subr.mxu0 0.0
    %90 = vmatpush1.msra.mxu0 %v54
    %91 = vmatprep.subr.mxu0 0.0
    %92 = vmatpush1.msra.mxu0 %v55
    %93 = vmatprep.subr.mxu0 0.0
    %94 = vmatpush1.msra.mxu0 %v56
    %95 = vmatprep.subr.mxu0 0.0
    %96 = vmatpush1.msra.mxu0 %v57
    %97 = vmatprep.subr.mxu0 0.0
    %98 = vmatpush1.msra.mxu0 0.0
    %99 = vmatprep.subr.mxu0 0.0
    %100 = vmatpush1.msra.mxu0 0.0
    %101 = vmatprep.subr.mxu0 0.0
    %102 = vmatpush1.msra.mxu0 0.0
    %103 = vmatprep.subr.mxu0 0.0
    %104 = vmatpush1.msra.mxu0 0.0
    %105 = vmatprep.subr.mxu0 0.0
    %106 = vmatpush1.msra.mxu0 0.0
    %107 = vmatprep.subr.mxu0 0.0
    %108 = vmatpush1.msra.mxu0 0.0
    %109 = vmatprep.subr.mxu0 0.0
    %110 = vmatpush1.msra.mxu0 0.0
    %111 = vmatprep.subr.mxu0 0.0
    %112 = vmatpush1.msra.mxu0 0.0
    %113 = vmatprep.subr.mxu0 0.0
    %114 = vmatpush1.msra.mxu0 0.0
    %115 = vmatprep.subr.mxu0 0.0
    %116 = vmatpush1.msra.mxu0 0.0
    %117 = vmatprep.subr.mxu0 0.0
    %118 = vmatpush1.msra.mxu0 0.0
    %119 = vmatprep.subr.mxu0 0.0
    %120 = vmatpush1.msra.mxu0 0.0
    %121 = vmatprep.subr.mxu0 0.0
    %122 = vmatpush1.msra.mxu0 0.0
    %123 = vmatprep.subr.mxu0 0.0
    %124 = vmatpush1.msra.mxu0 0.0
    %125 = vmatprep.subr.mxu0 0.0
    %126 = vmatpush1.msra.mxu0 0.0
    %127 = vmatprep.subr.mxu0 0.0
    %128 = vmatpush1.msra.mxu0 0.0
    %129 = vmatprep.mubr.f32.mxu0 0.0
    %130 = vmatmul.mubr.f32.gmra.mrb[0].mxu0 %v40
    %v131 = vpop.f32.mrb[0].mxu0
    %v132 = vadd.f32 %v63, %v131
    %v133 = vpop.f32.mrb[0].mxu0
    %134 = vmatprep.mubr.f32.mxu0 0.0
    %135 = vmatmul.mubr.f32.gmra.mrb[0].mxu0 %v41
    %v136 = vpop.f32.mrb[0].mxu0
    %v137 = vadd.f32 %v63, %v136
    %v138 = vpop.f32.mrb[0].mxu0
    %139 = vdwg.mxu0
    %v140 = vpack.c.bf16 %v137, %v132
    %v142 = vunpack.c.l.b16 %v140
    %v143 = vunpack.c.h.b16 %v140
    %v144 = vpack.c.b16 %v142, %v142
    %v145 = vpack.c.b16 %v143, %v143
    %148 = vst [vmem:[%s3] sm:$0xf] %v144
    %149 = vst [vmem:[%s3 + $0x4] sm:$0xf] %v145
    // Predicated region
    $region22: #{_forward.3} parent=1 // pred_check
      _
    $region23: #{_forward.3} parent=1 // pred_check_branch
      %151 = sbr.rel (0) target = $region25
    $region24: #{_forward.3} parent=1 // pred_region
      _
    $region25: #{_forward.3} parent=1 // pred_fallthru
      _
    // Predicated region
    $region26: #{_forward.3} parent=1 // pred_check
      _
    $region27: #{_forward.3} parent=1 // pred_check_branch
      %153 = sbr.rel (0) target = $region29
    $region28: #{_forward.3} parent=1 // pred_region
      _
    $region29: #{_forward.3} parent=1 // pred_fallthru
      _
    %154 = vsyncpa [#allocation3], 1
    %155 = vsyncpa [#allocation5], 1

</llo_original>
